<compile_context>
chip_gen: v5e
topology: v5e:2x2
jax: 0.10.0
libtpu: 0.0.40
codegen_flags: <defaults>
</compile_context>

<pallas_src>
import functools
import math

import jax
import jax.numpy as jnp
from jax import lax
from jax.experimental import pallas as pl
from jax.experimental.pallas import tpu as pltpu

_SUBLANE = 8
_LANE = 128


def _round_up(x, m):
    return ((x + m - 1) // m) * m


def _tpu_vmem_capacity_bytes():
    cap = 64 * 1024 * 1024          # conservative default (v7x per-TensorCore VMEM)
    try:
        cap = int(getattr(pltpu.get_tpu_info(), "vmem_capacity_bytes", cap))
    except Exception:
        pass
    return cap


def _choose_tiles(n, row_tile, col_tile):
    """Returns (TM, TN, N_pad): TM % 8 == 0, TN % 128 == 0 (or single tile), TM | TN | N_pad."""
    if n <= row_tile and n <= col_tile:
        n_pad = _round_up(n, _SUBLANE)
        return n_pad, n_pad, n_pad
    tn = max(_LANE, (min(col_tile, _round_up(n, _LANE)) // _LANE) * _LANE)
    tm = max(_SUBLANE, (min(row_tile, tn) // _SUBLANE) * _SUBLANE)
    while tn % tm:
        tm -= _SUBLANE
    return tm, tn, _round_up(n, tn)


def _combined_loss_kernel(street_ref, sat_ref, diag_ref, a_row_ref, out_ref, acc_ref,
                          *, n_valid, inv_temp, w2, ragged):
    """One (TM, TN) tile of the similarity matrix.

    Packed per-row scratch lanes:
      0: running max of logits     1: running sum of exp(logits - max)
      2: s2p softplus row sum      3: p2s softplus row sum
      4: a_col = exp(-2w * diag)
    On the last column tile the per-row results (lse, s2p_sum, p2s_sum) are
    written to the (TM, 8) output block.
    """
    j = pl.program_id(1)
    tm = acc_ref.shape[0]
    tn = sat_ref.shape[0]

    # ---------------- init per row block ----------------
    @pl.when(j == 0)
    def _init():
        acc_ref[...] = jnp.zeros((tm, 8), jnp.float32)
        acc_ref[:, 0:1] = jnp.full((tm, 1), -jnp.inf, dtype=jnp.float32)
        acc_ref[:, 4:5] = jnp.exp(-w2 * diag_ref[...])

    # ------- (TM, TN) similarity tile: (bf16) operands -> MXU, f32 accumulation -------
    sims = lax.dot_general(
        street_ref[...], sat_ref[...],
        dimension_numbers=(((1,), (1,)), ((), ())),
        preferred_element_type=jnp.float32)

    if ragged:
        col_ids = j * tn + lax.broadcasted_iota(jnp.int32, (tm, tn), 1)
        col_ok = col_ids < n_valid

    # ------- contrastive: online logsumexp across column tiles -------
    logits = sims * inv_temp
    if ragged:
        logits = jnp.where(col_ok, logits, -jnp.inf)
    m_old = acc_ref[:, 0:1]
    m_new = jnp.maximum(m_old, jnp.max(logits, axis=1, keepdims=True))
    acc_ref[:, 1:2] = (acc_ref[:, 1:2] * jnp.exp(m_old - m_new)
                       + jnp.sum(jnp.exp(logits - m_new), axis=1, keepdims=True))
    acc_ref[:, 0:1] = m_new

    # ------- triplet: one shared exp slab feeds both directions -------
    # pos - dists == 2*(sims - diag);  exp(2w*(sims - diag)) = e_t * exp(-2w*diag)
    e_t = jnp.exp(w2 * sims)
    s2p = jnp.log(1.0 + e_t * acc_ref[:, 4:5])          # a_col, (TM, 1)
    p2s = jnp.log(1.0 + e_t * a_row_ref[...])           # a_row, (1, TN)
    if ragged:
        s2p = jnp.where(col_ok, s2p, 0.0)
        p2s = jnp.where(col_ok, p2s, 0.0)
    acc_ref[:, 2:3] += jnp.sum(s2p, axis=1, keepdims=True)
    acc_ref[:, 3:4] += jnp.sum(p2s, axis=1, keepdims=True)

    # ---------------- finalize per row block ----------------
    @pl.when(j == pl.num_programs(1) - 1)
    def _finalize():
        lse = acc_ref[:, 0:1] + jnp.log(acc_ref[:, 1:2])
        lane = lax.broadcasted_iota(jnp.int32, (tm, 8), 1)
        out_ref[...] = jnp.where(lane == 0, lse,
                       jnp.where(lane == 1, acc_ref[:, 2:3],
                       jnp.where(lane == 2, acc_ref[:, 3:4], 0.0)))


def combined_loss(street_embeddings, satellite_embeddings, temperature=0.07,
                  triplet_weight=10.0, contrastive_weight=1.0,
                  row_tile=None, col_tile=None, compute_dtype=jnp.bfloat16):
    """Forward pass of CombinedLoss; returns (total, {'total','contrastive','triplet'})."""
    N, D = street_embeddings.shape
    assert satellite_embeddings.shape == (N, D)
    inv_temp = float(1.0 / temperature)
    w2 = float(2.0 * triplet_weight)

    cap = _tpu_vmem_capacity_bytes()
    if col_tile is None:
        col_tile = 512 if cap >= 96 * 1024 * 1024 else 256   # smaller column tiles on 64 MiB parts
    if row_tile is None:
        row_tile = 256
    tm, tn, n_pad = _choose_tiles(N, row_tile, col_tile)
    ragged = n_pad != N

    s = street_embeddings.astype(compute_dtype)
    p = satellite_embeddings.astype(compute_dtype)
    # Diagonal of sims from the *same* (possibly bf16-rounded) operands the MXU sees.
    diag = jnp.sum(s.astype(jnp.float32) * p.astype(jnp.float32), axis=1)        # (N,)
    a = jnp.exp(-w2 * diag)

    pad = n_pad - N
    s = jnp.pad(s, ((0, pad), (0, 0)))
    p = jnp.pad(p, ((0, pad), (0, 0)))
    diag_p = jnp.pad(diag, (0, pad)).reshape(n_pad, 1)
    a_row = jnp.pad(a, (0, pad)).reshape(1, n_pad)      # padded columns carry a == 0

    kernel = functools.partial(_combined_loss_kernel, n_valid=N, inv_temp=inv_temp,
                               w2=w2, ragged=ragged)
    itemsize = jnp.dtype(compute_dtype).itemsize
    cost = pl.CostEstimate(
        flops=2 * n_pad * n_pad * D + 8 * n_pad * n_pad,
        transcendentals=4 * n_pad * n_pad,
        bytes_accessed=(1 + n_pad // tm) * n_pad * D * itemsize + n_pad * 8 * 4)

    out = pl.pallas_call(
        kernel,
        out_shape=jax.ShapeDtypeStruct((n_pad, 8), jnp.float32),
        grid_spec=pltpu.PrefetchScalarGridSpec(
            num_scalar_prefetch=0,
            grid=(n_pad // tm, n_pad // tn),
            in_specs=[
                pl.BlockSpec((tm, D), lambda i, j: (i, 0)),   # street rows for this block
                pl.BlockSpec((tn, D), lambda i, j: (j, 0)),   # satellite rows for this column tile
                pl.BlockSpec((tm, 1), lambda i, j: (i, 0)),   # diag (column layout)
                pl.BlockSpec((1, tn), lambda i, j: (0, j)),   # exp(-2w*diag) (row layout)
            ],
            out_specs=pl.BlockSpec((tm, 8), lambda i, j: (i, 0)),
            scratch_shapes=[pltpu.VMEM((tm, 8), jnp.float32)],  # packed per-row accumulators
        ),
        compiler_params=pltpu.CompilerParams(
            dimension_semantics=("parallel", "arbitrary"),
            vmem_limit_bytes=max(32 * 1024 * 1024,
                                 min(int(cap * 0.85), 100 * 1024 * 1024))),
        cost_estimate=cost,
    )(s, p, diag_p, a_row)

    lse = out[:N, 0]
    s2p_sum = jnp.sum(out[:N, 1])
    p2s_sum = jnp.sum(out[:N, 2])

    contrastive = jnp.mean(lse - inv_temp * diag)
    diag_corr = N * math.log(2.0)        # softplus(0) of the N masked diagonal entries
    denom = float(N * (N - 1))
    triplet = ((s2p_sum - diag_corr) + (p2s_sum - diag_corr)) / (2.0 * denom)
    total = contrastive_weight * contrastive + triplet
    # TODO(synk): PyTorch returns host floats (.item()) in the dict; JAX scalars are returned.
    return total, {"total": total, "contrastive": contrastive, "triplet": triplet}


def _reference(street, sat, temperature=0.07, triplet_weight=10.0,
               contrastive_weight=1.0, compute_dtype=jnp.float32):
    # Pure-JAX mirror of the PyTorch forward, evaluated on compute_dtype-rounded operands.
    s = street.astype(compute_dtype).astype(jnp.float32)
    p = sat.astype(compute_dtype).astype(jnp.float32)
    sims = s @ p.T
    logits = sims / temperature
    n = logits.shape[0]
    lse = jax.scipy.special.logsumexp(logits, axis=1)
    contrastive = jnp.mean(lse - jnp.diag(logits))
    dists = 2.0 - 2.0 * sims
    pos = jnp.diag(dists)
    eye = jnp.eye(n, dtype=bool)
    l_s2p = jnp.log(1.0 + jnp.exp(triplet_weight * (pos[:, None] - dists)))
    l_s2p = jnp.where(eye, 0.0, l_s2p).sum() / (n * (n - 1))
    l_p2s = jnp.log(1.0 + jnp.exp(triplet_weight * (pos[None, :] - dists)))
    l_p2s = jnp.where(eye, 0.0, l_p2s).sum() / (n * (n - 1))
    triplet = (l_s2p + l_p2s) / 2.0
    total = contrastive_weight * contrastive + triplet
    return total, contrastive, triplet


if __name__ == "__main__":
    def make_inputs(key, n, d):
        k1, k2 = jax.random.split(key)
        a = jax.random.normal(k1, (n, d), dtype=jnp.float32)
        b = jax.random.normal(k2, (n, d), dtype=jnp.float32)
        a = a / jnp.linalg.norm(a, axis=1, keepdims=True)
        b = b / jnp.linalg.norm(b, axis=1, keepdims=True)
        return a, b

    keys = jax.random.split(jax.random.PRNGKey(0), 3)

    # 1) tiny single-tile case, f32 path (exact semantics vs. the reference).
    s, p = make_inputs(keys[0], 8, 32)
    total, parts = combined_loss(s, p, compute_dtype=jnp.float32)
    total = jax.block_until_ready(total)
    rt, rc, rtr = _reference(s, p)
    assert jnp.allclose(total, rt, rtol=5e-4, atol=5e-4), (total, rt)
    assert jnp.allclose(parts["contrastive"], rc, rtol=5e-4, atol=5e-4), (parts["contrastive"], rc)
    assert jnp.allclose(parts["triplet"], rtr, rtol=5e-4, atol=5e-4), (parts["triplet"], rtr)

    # 2) ragged multi-tile f32 case: N=200 pads to 256, grid = (4 row blocks x 2
    #    column tiles) -> exercises the parallel row axis, the online logsumexp
    #    across column tiles and the padded-row/column masking.
    s, p = make_inputs(keys[1], 200, 64)
    total, parts = combined_loss(s, p, row_tile=64, col_tile=128, compute_dtype=jnp.float32)
    total = jax.block_until_ready(total)
    rt, rc, rtr = _reference(s, p)
    assert jnp.allclose(total, rt, rtol=5e-4, atol=5e-4), (total, rt)
    assert jnp.allclose(parts["contrastive"], rc, rtol=5e-4, atol=5e-4), (parts["contrastive"], rc)
    assert jnp.allclose(parts["triplet"], rtr, rtol=5e-4, atol=5e-4), (parts["triplet"], rtr)

    # 3) default bf16-MXU path, aligned N=256, grid (2 x 2); compared against the
    #    reference evaluated on the same bf16-rounded operands.
    s, p = make_inputs(keys[2], 256, 64)
    total, parts = combined_loss(s, p, row_tile=128, col_tile=128)
    total = jax.block_until_ready(total)
    rt, rc, rtr = _reference(s, p, compute_dtype=jnp.bfloat16)
    assert jnp.allclose(total, rt, rtol=2e-3, atol=2e-3), (total, rt)
    assert jnp.allclose(parts["contrastive"], rc, rtol=2e-3, atol=2e-3), (parts["contrastive"], rc)
    assert jnp.allclose(parts["triplet"], rtr, rtol=2e-3, atol=2e-3), (parts["triplet"], rtr)

    print("KERNEL_OK")
</pallas_src>

<mosaic_0001>
module attributes {stable_mosaic.version = 11 : i64} {
  func.func @_combined_loss_kernel(%arg0: i32, %arg1: i32, %arg2: memref<8x32xf32, #tpu.memory_space<vmem>>, %arg3: memref<8x32xf32, #tpu.memory_space<vmem>>, %arg4: memref<8x1xf32, #tpu.memory_space<vmem>>, %arg5: memref<1x8xf32, #tpu.memory_space<vmem>>, %arg6: memref<8x8xf32, #tpu.memory_space<vmem>>, %arg7: memref<8x8xf32, #tpu.memory_space<vmem>>) attributes {dimension_semantics = [#tpu.dimension_semantics<parallel>, #tpu.dimension_semantics<arbitrary>], iteration_bounds = array<i64: 1, 1>, scalar_prefetch = 0 : i64, scratch_operands = 1 : i64, tpu.core_type = #tpu.core_type<tc>, window_params = [{transform_indices = @transform_0, window_bounds = array<i64: 8, 32>}, {transform_indices = @transform_1, window_bounds = array<i64: 8, 32>}, {transform_indices = @transform_2, window_bounds = array<i64: 8, 1>}, {transform_indices = @transform_3, window_bounds = array<i64: 1, 8>}, {transform_indices = @transform_4, window_bounds = array<i64: 8, 8>}]} {
    %c0_i32 = arith.constant 0 : i32
    %0 = arith.cmpi eq, %arg1, %c0_i32 : i32
    %1 = arith.extui %0 : i1 to i32
    %c0_i32_0 = arith.constant 0 : i32
    %2 = arith.cmpi ne, %1, %c0_i32_0 : i32
    scf.if %2 {
      %cst_30 = arith.constant 0.000000e+00 : f32
      %52 = vector.broadcast %cst_30 : f32 to vector<8x8xf32>
      %c0_31 = arith.constant 0 : index
      %c0_32 = arith.constant 0 : index
      %53 = vector.load %arg7[%c0_31, %c0_32] : memref<8x8xf32, #tpu.memory_space<vmem>>, vector<8x8xf32>
      tpu.vector_store %arg7[%c0_31, %c0_32], %52 {strides = array<i32>} : memref<8x8xf32, #tpu.memory_space<vmem>>, vector<8x8xf32>,
      %cst_33 = arith.constant 0xFF800000 : f32
      %54 = vector.broadcast %cst_33 : f32 to vector<8x1xf32>
      %c0_34 = arith.constant 0 : index
      %c0_35 = arith.constant 0 : index
      %55 = vector.load %arg7[%c0_34, %c0_35] : memref<8x8xf32, #tpu.memory_space<vmem>>, vector<8x1xf32>
      tpu.vector_store %arg7[%c0_34, %c0_35], %54 {strides = array<i32>} : memref<8x8xf32, #tpu.memory_space<vmem>>, vector<8x1xf32>,
      %c0_36 = arith.constant 0 : index
      %c0_37 = arith.constant 0 : index
      %56 = vector.load %arg4[%c0_36, %c0_37] : memref<8x1xf32, #tpu.memory_space<vmem>>, vector<8x1xf32>
      %cst_38 = arith.constant -2.000000e+01 : f32
      %57 = vector.broadcast %cst_38 : f32 to vector<8x1xf32>
      %58 = arith.mulf %57, %56 : vector<8x1xf32>
      %59 = math.exp %58 : vector<8x1xf32>
      %c0_39 = arith.constant 0 : index
      %c4_40 = arith.constant 4 : index
      %60 = vector.load %arg7[%c0_39, %c4_40] : memref<8x8xf32, #tpu.memory_space<vmem>>, vector<8x1xf32>
      tpu.vector_store %arg7[%c0_39, %c4_40], %59 {strides = array<i32>} : memref<8x8xf32, #tpu.memory_space<vmem>>, vector<8x1xf32>,
    } else {
    }
    %c0 = arith.constant 0 : index
    %c0_1 = arith.constant 0 : index
    %3 = vector.load %arg2[%c0, %c0_1] : memref<8x32xf32, #tpu.memory_space<vmem>>, vector<8x32xf32>
    %c0_2 = arith.constant 0 : index
    %c0_3 = arith.constant 0 : index
    %4 = vector.load %arg3[%c0_2, %c0_3] : memref<8x32xf32, #tpu.memory_space<vmem>>, vector<8x32xf32>
    %cst = arith.constant dense<0.000000e+00> : vector<8x8xf32>
    %5 = tpu.matmul %3, %4, %cst {dimension_numbers = #tpu.dot_dimension_numbers<[1], [1], [0], [0], [0, 0, 1, 0], [], []>} : vector<8x32xf32>, vector<8x32xf32>, vector<8x8xf32> -> vector<8x8xf32>
    %cst_4 = arith.constant 14.2857141 : f32
    %6 = vector.broadcast %cst_4 : f32 to vector<8x8xf32>
    %7 = arith.mulf %5, %6 : vector<8x8xf32>
    %c0_5 = arith.constant 0 : index
    %c0_6 = arith.constant 0 : index
    %8 = vector.load %arg7[%c0_5, %c0_6] : memref<8x8xf32, #tpu.memory_space<vmem>>, vector<8x1xf32>
    %cst_7 = arith.constant dense<0xFF800000> : vector<8xf32>
    %9 = vector.multi_reduction <maximumf>, %7, %cst_7 [1] : vector<8x8xf32> to vector<8xf32>
    %10 = vector.shape_cast %9 : vector<8xf32> to vector<8x1xf32>
    %11 = arith.maximumf %8, %10 : vector<8x1xf32>
    %c0_8 = arith.constant 0 : index
    %c1 = arith.constant 1 : index
    %12 = vector.load %arg7[%c0_8, %c1] : memref<8x8xf32, #tpu.memory_space<vmem>>, vector<8x1xf32>
    %13 = arith.subf %8, %11 : vector<8x1xf32>
    %14 = math.exp %13 : vector<8x1xf32>
    %15 = arith.mulf %12, %14 : vector<8x1xf32>
    %16 = vector.broadcast %11 : vector<8x1xf32> to vector<8x8xf32>
    %17 = arith.subf %7, %16 : vector<8x8xf32>
    %18 = math.exp %17 : vector<8x8xf32>
    %cst_9 = arith.constant dense<0.000000e+00> : vector<8xf32>
    %19 = vector.multi_reduction <add>, %18, %cst_9 [1] : vector<8x8xf32> to vector<8xf32>
    %20 = vector.shape_cast %19 : vector<8xf32> to vector<8x1xf32>
    %21 = arith.addf %15, %20 : vector<8x1xf32>
    %c0_10 = arith.constant 0 : index
    %c1_11 = arith.constant 1 : index
    %22 = vector.load %arg7[%c0_10, %c1_11] : memref<8x8xf32, #tpu.memory_space<vmem>>, vector<8x1xf32>
    tpu.vector_store %arg7[%c0_10, %c1_11], %21 {strides = array<i32>} : memref<8x8xf32, #tpu.memory_space<vmem>>, vector<8x1xf32>,
    %c0_12 = arith.constant 0 : index
    %c0_13 = arith.constant 0 : index
    %23 = vector.load %arg7[%c0_12, %c0_13] : memref<8x8xf32, #tpu.memory_space<vmem>>, vector<8x1xf32>
    tpu.vector_store %arg7[%c0_12, %c0_13], %11 {strides = array<i32>} : memref<8x8xf32, #tpu.memory_space<vmem>>, vector<8x1xf32>,
    %cst_14 = arith.constant 2.000000e+01 : f32
    %24 = vector.broadcast %cst_14 : f32 to vector<8x8xf32>
    %25 = arith.mulf %24, %5 : vector<8x8xf32>
    %26 = math.exp %25 : vector<8x8xf32>
    %c0_15 = arith.constant 0 : index
    %c4 = arith.constant 4 : index
    %27 = vector.load %arg7[%c0_15, %c4] : memref<8x8xf32, #tpu.memory_space<vmem>>, vector<8x1xf32>
    %28 = vector.broadcast %27 : vector<8x1xf32> to vector<8x8xf32>
    %29 = arith.mulf %26, %28 : vector<8x8xf32>
    %cst_16 = arith.constant 1.000000e+00 : f32
    %30 = vector.broadcast %cst_16 : f32 to vector<8x8xf32>
    %31 = arith.addf %30, %29 : vector<8x8xf32>
    %32 = math.log %31 : vector<8x8xf32>
    %c0_17 = arith.constant 0 : index
    %c0_18 = arith.constant 0 : index
    %33 = vector.load %arg5[%c0_17, %c0_18] : memref<1x8xf32, #tpu.memory_space<vmem>>, vector<1x8xf32>
    %34 = vector.broadcast %33 : vector<1x8xf32> to vector<8x8xf32>
    %35 = arith.mulf %26, %34 : vector<8x8xf32>
    %cst_19 = arith.constant 1.000000e+00 : f32
    %36 = vector.broadcast %cst_19 : f32 to vector<8x8xf32>
    %37 = arith.addf %36, %35 : vector<8x8xf32>
    %38 = math.log %37 : vector<8x8xf32>
    %c0_20 = arith.constant 0 : index
    %c2 = arith.constant 2 : index
    %39 = vector.load %arg7[%c0_20, %c2] : memref<8x8xf32, #tpu.memory_space<vmem>>, vector<8x1xf32>
    %cst_21 = arith.constant dense<0.000000e+00> : vector<8xf32>
    %40 = vector.multi_reduction <add>, %32, %cst_21 [1] : vector<8x8xf32> to vector<8xf32>
    %41 = vector.shape_cast %40 : vector<8xf32> to vector<8x1xf32>
    %42 = arith.addf %39, %41 : vector<8x1xf32>
    %c0_22 = arith.constant 0 : index
    %c2_23 = arith.constant 2 : index
    %43 = vector.load %arg7[%c0_22, %c2_23] : memref<8x8xf32, #tpu.memory_space<vmem>>, vector<8x1xf32>
    tpu.vector_store %arg7[%c0_22, %c2_23], %42 {strides = array<i32>} : memref<8x8xf32, #tpu.memory_space<vmem>>, vector<8x1xf32>,
    %c0_24 = arith.constant 0 : index
    %c3 = arith.constant 3 : index
    %44 = vector.load %arg7[%c0_24, %c3] : memref<8x8xf32, #tpu.memory_space<vmem>>, vector<8x1xf32>
    %cst_25 = arith.constant dense<0.000000e+00> : vector<8xf32>
    %45 = vector.multi_reduction <add>, %38, %cst_25 [1] : vector<8x8xf32> to vector<8xf32>
    %46 = vector.shape_cast %45 : vector<8xf32> to vector<8x1xf32>
    %47 = arith.addf %44, %46 : vector<8x1xf32>
    %c0_26 = arith.constant 0 : index
    %c3_27 = arith.constant 3 : index
    %48 = vector.load %arg7[%c0_26, %c3_27] : memref<8x8xf32, #tpu.memory_space<vmem>>, vector<8x1xf32>
    tpu.vector_store %arg7[%c0_26, %c3_27], %47 {strides = array<i32>} : memref<8x8xf32, #tpu.memory_space<vmem>>, vector<8x1xf32>,
    %c0_i32_28 = arith.constant 0 : i32
    %49 = arith.cmpi eq, %arg1, %c0_i32_28 : i32
    %50 = arith.extui %49 : i1 to i32
    %c0_i32_29 = arith.constant 0 : i32
    %51 = arith.cmpi ne, %50, %c0_i32_29 : i32
    scf.if %51 {
      %c0_30 = arith.constant 0 : index
      %c0_31 = arith.constant 0 : index
      %52 = vector.load %arg7[%c0_30, %c0_31] : memref<8x8xf32, #tpu.memory_space<vmem>>, vector<8x1xf32>
      %c0_32 = arith.constant 0 : index
      %c1_33 = arith.constant 1 : index
      %53 = vector.load %arg7[%c0_32, %c1_33] : memref<8x8xf32, #tpu.memory_space<vmem>>, vector<8x1xf32>
      %54 = math.log %53 : vector<8x1xf32>
      %55 = arith.addf %52, %54 : vector<8x1xf32>
      %56 = tpu.iota {dimensions = array<i32: 1>} : vector<8x8xi32>
      %c0_i32_34 = arith.constant 0 : i32
      %57 = vector.broadcast %c0_i32_34 : i32 to vector<8x8xi32>
      %58 = arith.cmpi eq, %56, %57 : vector<8x8xi32>
      %c1_i32 = arith.constant 1 : i32
      %59 = vector.broadcast %c1_i32 : i32 to vector<8x8xi32>
      %60 = arith.cmpi eq, %56, %59 : vector<8x8xi32>
      %c0_35 = arith.constant 0 : index
      %c2_36 = arith.constant 2 : index
      %61 = vector.load %arg7[%c0_35, %c2_36] : memref<8x8xf32, #tpu.memory_space<vmem>>, vector<8x1xf32>
      %c2_i32 = arith.constant 2 : i32
      %62 = vector.broadcast %c2_i32 : i32 to vector<8x8xi32>
      %63 = arith.cmpi eq, %56, %62 : vector<8x8xi32>
      %c0_37 = arith.constant 0 : index
      %c3_38 = arith.constant 3 : index
      %64 = vector.load %arg7[%c0_37, %c3_38] : memref<8x8xf32, #tpu.memory_space<vmem>>, vector<8x1xf32>
      %cst_39 = arith.constant 0.000000e+00 : f32
      %65 = vector.shape_cast %64 : vector<8x1xf32> to vector<8x1xf32>
      %66 = vector.broadcast %65 : vector<8x1xf32> to vector<8x8xf32>
      %67 = vector.broadcast %cst_39 : f32 to vector<8x8xf32>
      %68 = arith.select %63, %66, %67 : vector<8x8xi1>, vector<8x8xf32>
      %69 = vector.shape_cast %61 : vector<8x1xf32> to vector<8x1xf32>
      %70 = vector.broadcast %69 : vector<8x1xf32> to vector<8x8xf32>
      %71 = arith.select %60, %70, %68 : vector<8x8xi1>, vector<8x8xf32>
      %72 = vector.shape_cast %55 : vector<8x1xf32> to vector<8x1xf32>
      %73 = vector.broadcast %72 : vector<8x1xf32> to vector<8x8xf32>
      %74 = arith.select %58, %73, %71 : vector<8x8xi1>, vector<8x8xf32>
      %c0_40 = arith.constant 0 : index
      %c0_41 = arith.constant 0 : index
      %75 = vector.load %arg6[%c0_40, %c0_41] : memref<8x8xf32, #tpu.memory_space<vmem>>, vector<8x8xf32>
      tpu.vector_store %arg6[%c0_40, %c0_41], %74 {strides = array<i32>} : memref<8x8xf32, #tpu.memory_space<vmem>>, vector<8x8xf32>,
    } else {
    }
    return
  }
  func.func @transform_0(%arg0: i32, %arg1: i32) -> (i32, i32) {
    %c0_i32 = arith.constant 0 : i32
    %c0_i32_0 = arith.constant 0 : i32
    return %arg0, %c0_i32 : i32, i32
  }
  func.func @transform_1(%arg0: i32, %arg1: i32) -> (i32, i32) {
    %c0_i32 = arith.constant 0 : i32
    %c0_i32_0 = arith.constant 0 : i32
    return %arg1, %c0_i32 : i32, i32
  }
  func.func @transform_2(%arg0: i32, %arg1: i32) -> (i32, i32) {
    %c0_i32 = arith.constant 0 : i32
    %c0_i32_0 = arith.constant 0 : i32
    return %arg0, %c0_i32 : i32, i32
  }
  func.func @transform_3(%arg0: i32, %arg1: i32) -> (i32, i32) {
    %c0_i32 = arith.constant 0 : i32
    %c0_i32_0 = arith.constant 0 : i32
    return %c0_i32, %arg1 : i32, i32
  }
  func.func @transform_4(%arg0: i32, %arg1: i32) -> (i32, i32) {
    %c0_i32 = arith.constant 0 : i32
    %c0_i32_0 = arith.constant 0 : i32
    return %arg0, %c0_i32 : i32, i32
  }
}

</mosaic_0001>

<llo_original>
// kernel: tpu_custom_call.1
$region0: #{tpu_custom_call.1}
  #allocation0 [shape = 'u32[]', space=smem, size = 0x4, offset = 0x4, fixed_abs, tag = 'smem constant byte address 0x4 - core index']
  #allocation1 [shape = 'u32[72,128]{1,0:T(1,128)}', space=vmem, size = 0x9000, scoped, tag = 'internal scratch']
  #allocation2 [shape = 'f32[8,8]{1,0:T(8,128)}', space=vmem, size = 0x1000, scoped, tag = 'scratch operand']
  %s0 = inlined_call_operand.vmem [shape: f32[8,32], index: 0, kind: input, shape index: {}]
  %s1 = inlined_call_operand.hbm [shape: f32[8,32], index: 1, kind: input, shape index: {}]
  %s2 = inlined_call_operand.vmem [shape: f32[8,1], index: 2, kind: input, shape index: {}]
  %s3 = inlined_call_operand.vmem [shape: f32[1,8], index: 3, kind: input, shape index: {}]
  %s4 = inlined_call_operand.hbm [shape: f32[8,8], index: 4, kind: output, shape index: {}]
  %s5 = sld [smem:[#allocation0]]
  $region38: #{tpu_custom_call.1} parent=0
    _
  %s7 = ssub.s32 1, %s5
  %s8 = scalar_select 0, %s7, %s5
  $region1: #{tpu_custom_call.1} parent=0
    #allocation3 [shape = 'u8[4096]{0}', space=vmem, size = 0x1000, scoped, tag = 'input window, operand 1, single buffered']
    #allocation4 [shape = 's32[1]{0}', space=sflag, size = 0x4, scoped, tag = 'scoped memory for tpu_custom_call.1']
    #allocation5 [shape = 's32[1]{0}', space=sflag, size = 0x4, scoped, tag = 'scoped memory for tpu_custom_call.1']
    #allocation6 [shape = 'u8[4096]{0}', space=vmem, size = 0x1000, scoped, tag = 'output window, operand 0, single buffered']
    %9 = vsyncpa [#allocation4], 0
    %10 = vsyncpa [#allocation5], 0
    // Predicated region
    $region2: #{tpu_custom_call.1} parent=1 // pred_check
      _
    $region3: #{tpu_custom_call.1} parent=1 // pred_check_branch
      %12 = sbr.rel (0) target = $region5
    $region4: #{tpu_custom_call.1} parent=1 // pred_region
      _
    $region5: #{tpu_custom_call.1} parent=1 // pred_fallthru
      _
    // Predicated region
    $region6: #{tpu_custom_call.1} parent=1 // pred_check
      _
    $region7: #{tpu_custom_call.1} parent=1 // pred_check_branch
      %14 = sbr.rel (0) target = $region9
    $region8: #{tpu_custom_call.1} parent=1 // pred_region
      %16 = vsyncadd [#allocation4], 0
      %s18 = sshll.u32 %s1, 4
      %s19 = int_to_ptr.hbm [resolvable:$true] %s18
      %s20 = sshll.u32 [#allocation3], 4
      %s21 = int_to_ptr.vmem [resolvable:$true] %s20
      %23 = dma.hbm_to_vmem [thread:$0]  %s19, 128, %s21, [#allocation4]
    $region9: #{tpu_custom_call.1} parent=1 // pred_fallthru
      _
    // Predicated region
    $region10: #{tpu_custom_call.1} parent=1 // pred_check
      _
    $region11: #{tpu_custom_call.1} parent=1 // pred_check_branch
      %25 = sbr.rel (0) target = $region13
    $region12: #{tpu_custom_call.1} parent=1 // pred_region
      _
    $region13: #{tpu_custom_call.1} parent=1 // pred_fallthru
      _
    // Predicated region
    $region14: #{tpu_custom_call.1} parent=1 // pred_check
      _
    $region15: #{tpu_custom_call.1} parent=1 // pred_check_branch
      %27 = sbr.rel (0) target = $region17
    $region16: #{tpu_custom_call.1} parent=1 // pred_region
      _
    $region17: #{tpu_custom_call.1} parent=1 // pred_fallthru
      _
    // Predicated region
    $region18: #{tpu_custom_call.1} parent=1 // pred_check
      _
    $region19: #{tpu_custom_call.1} parent=1 // pred_check_branch
      %29 = sbr.rel (0) target = $region21
    $region20: #{tpu_custom_call.1} parent=1 // pred_region
      %31 = dma.done [#allocation4], 128
    $region21: #{tpu_custom_call.1} parent=1 // pred_fallthru
      _
    %p32 = scmp.eq.s32.totalorder 0, 0
    // Predicated region
    $region22: #{tpu_custom_call.1} parent=1 // pred_check
      %p33 = pneg %p32
    $region23: #{tpu_custom_call.1} parent=1 // pred_check_branch
      %35 = sbr.rel (%p33) target = $region25
    $region24: #{tpu_custom_call.1} parent=1 // pred_region
      %vm36 = vcmask 64512
      %37 = vst.msk [vmem:[#allocation2] sm:$0xff] %vm36, 0.0
      %vm38 = vcmask 7168
      %39 = vst.msk [vmem:[#allocation2] sm:$0xff] %vm38, -inf
      %v40 = vld [vmem:[%s2] sm:$0xff]
      %v41 = vmul.f32 %v40, -20.0
      %v42 = vmul.f32 %v41, 1.442695
      %v43 = vpow.pop %v42
      %45 = vrot.lane.b32.xlu0 %v43, 4
      %v46 = vpop.permute.xlu0 %45
      %vm48 = vcmask 39968
      %49 = vst.msk [vmem:[#allocation2] sm:$0xff] %vm48, %v46
    $region25: #{tpu_custom_call.1} parent=1 // pred_fallthru
      _
    %v50 = vld [vmem:[%s0] sm:$0xff]
    %v51 = vld [vmem:[#allocation3] sm:$0xff]
    %vm52 = vcmask 261120
    %v54 = vsel %vm52, %v50, 0
    %v57 = vsel %vm52, %v51, 0
    %59 = vmatpush.xpose.msra.mxu0 0.0
    %60 = vmatpush.xpose.msra.mxu0 0.0
    %61 = vmatpush.xpose.msra.mxu0 0.0
    %62 = vmatpush.xpose.msra.mxu0 0.0
    %63 = vmatpush.xpose.msra.mxu0 0.0
    %64 = vmatpush.xpose.msra.mxu0 0.0
    %65 = vmatpush.xpose.msra.mxu0 0.0
    %66 = vmatpush.xpose.msra.mxu0 0.0
    %67 = vmatpush.xpose.msra.mxu0 0.0
    %68 = vmatpush.xpose.msra.mxu0 0.0
    %69 = vmatpush.xpose.msra.mxu0 0.0
    %70 = vmatpush.xpose.msra.mxu0 0.0
    %71 = vmatpush.xpose.msra.mxu0 0.0
    %72 = vmatpush.xpose.msra.mxu0 0.0
    %73 = vmatpush.xpose.msra.mxu0 0.0
    %74 = vmatpush.xpose.msra.mxu0 %v57
    %75 = vmatmul.f32.gmra.mxu0 %v54
    %v76 = vpop.f32.mrf.mxu0
    %v77 = vadd.f32 0.0, %v76
    %78 = vdwg.mxu0
    %v79 = vmul.f32 %v77, 14.285714
    %v80 = vld [vmem:[#allocation2] sm:$0xff]
    %vm81 = vcmask 64512
    %v82 = vsel %vm81, %v79, -inf
    %83 = vmax.xlane.f32.xlu0 %v82
    %v84 = vpop.xlane.xlu0 %83
    %v85 = vmax.f32 %v80, %v84
    %v86 = vsub.f32 %v80, %v85
    %v87 = vmul.f32 %v86, 1.442695
    %v88 = vpow.pop %v87
    %90 = vrot.lane.b32.xlu0 %v88, 1
    %v91 = vpop.permute.xlu0 %90
    %v93 = vmul.f32 %v80, %v91
    %95 = vset.pattern.permute.xlu0 0
    %96 = vperm.xlu0 %95, %v85
    %v97 = vpop.permute.xlu0 %96
    %v99 = vsub.f32 %v79, %v97
    %v100 = vmul.f32 %v99, 1.442695
    %v101 = vpow.pop %v100
    %v102 = vsel %vm81, %v101, 0.0
    %103 = vadd.xlane.f32.xlu0 %v102
    %v104 = vpop.xlane.xlu0 %103
    %v105 = vadd.f32 %v93, %v104
    %vm106 = vcmask 15368
    %107 = vst.msk [vmem:[#allocation2] sm:$0xff] %vm106, %v105
    %vm108 = vcmask 7168
    %109 = vst.msk [vmem:[#allocation2] sm:$0xff] %vm108, %v85
    %v110 = vmul.f32 %v77, 20.0
    %v111 = vmul.f32 %v110, 1.442695
    %v112 = vpow.pop %v111
    %v113 = vld [vmem:[#allocation2] sm:$0xff]
    %115 = vset.pattern.permute.xlu0 4
    %116 = vperm.xlu0 %115, %v113
    %v117 = vpop.permute.xlu0 %116
    %v119 = vmul.f32 %v112, %v117
    %v120 = vadd.f32 %v119, 1.0
    %v121 = vlog2.pop %v120
    %v122 = vmul.f32 %v121, 0.6931472
    %v123 = vld [vmem:[%s3] sm:$0x1]
    %v125 = vperm.slane %v123, 0
    %v127 = vmul.f32 %v112, %v125
    %v128 = vadd.f32 %v127, 1.0
    %v129 = vlog2.pop %v128
    %v130 = vmul.f32 %v129, 0.6931472
    %v131 = vsel %vm81, %v122, 0.0
    %132 = vadd.xlane.f32.xlu0 %v131
    %v133 = vpop.xlane.xlu0 %132
    %v134 = vadd.f32 %v113, %v133
    %vm135 = vcmask 23568
    %136 = vst.msk [vmem:[#allocation2] sm:$0xff] %vm135, %v134
    %v137 = vld [vmem:[#allocation2] sm:$0xff]
    %v138 = vsel %vm81, %v130, 0.0
    %139 = vadd.xlane.f32.xlu0 %v138
    %v140 = vpop.xlane.xlu0 %139
    %v141 = vadd.f32 %v137, %v140
    %vm142 = vcmask 31768
    %143 = vst.msk [vmem:[#allocation2] sm:$0xff] %vm142, %v141
    // Predicated region
    $region26: #{tpu_custom_call.1} parent=1 // pred_check
      %p144 = pneg %p32
    $region27: #{tpu_custom_call.1} parent=1 // pred_check_branch
      %146 = sbr.rel (%p144) target = $region29
    $region28: #{tpu_custom_call.1} parent=1 // pred_region
      %v147 = vld [vmem:[#allocation2] sm:$0xff]
      %v148 = vlog2.pop %v147
      %v149 = vmul.f32 %v148, 0.6931472
      %151 = vrot.lane.b32.xlu0 %v149, 127
      %v152 = vpop.permute.xlu0 %151
      %v154 = vadd.f32 %v147, %v152
      %v155 = vlaneseq
      %v156 = vand.u32 %v155, 127
      %vm157 = vcmp.eq.s32.totalorder %v156, 0
      %vm158 = vcmp.eq.s32.totalorder %v156, 1
      %vm159 = vcmp.eq.s32.totalorder %v156, 2
      %161 = vset.pattern.permute.xlu0 3
      %162 = vperm.xlu0 %161, %v147
      %v163 = vpop.permute.xlu0 %162
      %v165 = vsel %vm159, %v163, 0.0
      %166 = vset.pattern.permute.xlu0 2
      %167 = vperm.xlu0 %166, %v147
      %v168 = vpop.permute.xlu0 %167
      %v170 = vsel %vm158, %v168, %v165
      %172 = vset.pattern.permute.xlu0 0
      %173 = vperm.xlu0 %172, %v154
      %v174 = vpop.permute.xlu0 %173
      %v176 = vsel %vm157, %v174, %v170
      %177 = vst.msk [vmem:[#allocation6] sm:$0xff] %vm81, %v176
    $region29: #{tpu_custom_call.1} parent=1 // pred_fallthru
      _
    // Predicated region
    $region30: #{tpu_custom_call.1} parent=1 // pred_check
      _
    $region31: #{tpu_custom_call.1} parent=1 // pred_check_branch
      %179 = sbr.rel (0) target = $region33
    $region32: #{tpu_custom_call.1} parent=1 // pred_region
      %181 = vsyncadd [#allocation5], 0
      %s183 = sshll.u32 [#allocation6], 4
      %s184 = int_to_ptr.vmem [resolvable:$true] %s183
      %s185 = sshll.u32 %s4, 4
      %s186 = int_to_ptr.hbm [resolvable:$true] %s185
      %188 = dma.vmem_to_hbm [thread:$0]  %s184, 128, %s186, [#allocation5]
    $region33: #{tpu_custom_call.1} parent=1 // pred_fallthru
      _
    // Predicated region
    $region34: #{tpu_custom_call.1} parent=1 // pred_check
      _
    $region35: #{tpu_custom_call.1} parent=1 // pred_check_branch
      %190 = sbr.rel (0) target = $region37
    $region36: #{tpu_custom_call.1} parent=1 // pred_region
      %192 = dma.done [#allocation5], 128
    $region37: #{tpu_custom_call.1} parent=1 // pred_fallthru
      _
    %193 = vsyncpa [#allocation4], 1
    %194 = vsyncpa [#allocation5], 1

</llo_original>
